<compile_context>
chip_gen: v5e
topology: v5e:2x2
jax: 0.10.0
libtpu: 0.0.40
codegen_flags: <defaults>
</compile_context>

<pallas_src>
import functools
import math

import jax
import jax.numpy as jnp
from jax.experimental import pallas as pl
from jax.experimental.pallas import tpu as pltpu


_LANES = 1024          # lane-dense last dim (multiple of 128)
_MAX_TILE_ROWS = 512   # 512 x 1024 f32 = 2 MiB per tile -> 4x tile fits every gen's VMEM


def _round_up(x: int, m: int) -> int:
    return ((x + m - 1) // m) * m


# ----- TPU (Mosaic) path: noise drawn on-chip with the hardware PRNG --------
def _noise_kernel_onchip(seed_ref, x_ref, o_ref, *, mean, std):
    # Re-seed per grid step so the "parallel" grid axis (2 TCs on v7x) is
    # deterministic and the result is independent of the tile size.
    pltpu.prng_seed(seed_ref[0] + pl.program_id(0))
    noise = pltpu.stateful_normal(x_ref.shape, jnp.float32)
    out = x_ref[...].astype(jnp.float32) + noise * std + mean
    o_ref[...] = out.astype(o_ref.dtype)


# ----- Portable path: noise precomputed in JAX, fused affine-add in kernel --
def _noise_kernel_addonly(x_ref, n_ref, o_ref, *, mean, std):
    out = x_ref[...].astype(jnp.float32) + n_ref[...] * std + mean
    o_ref[...] = out.astype(o_ref.dtype)


def gaussian_noise(img: jax.Array, seed: int = 0, mean: float = 0.0,
                   std: float = 0.1) -> jax.Array:
    """Adds Gaussian noise to `img` (any shape), matching GaussianNoise.forward."""
    orig_shape = img.shape
    orig_dtype = img.dtype

    total = int(math.prod(orig_shape)) if orig_shape else 1

    # Lane-dense 2-D layout: cols = 1024, rows a multiple of 8, padded so the
    # tile grid divides evenly.  Padding is sliced off after the call.
    rows_needed = max(1, pl.cdiv(total, _LANES))
    tile_rows = min(_MAX_TILE_ROWS, _round_up(rows_needed, 8))
    rows = _round_up(rows_needed, tile_rows)
    padded_total = rows * _LANES

    flat = jnp.ravel(img)
    if padded_total != total:
        flat = jnp.pad(flat, (0, padded_total - total))
    x2d = flat.reshape(rows, _LANES)

    grid = (rows // tile_rows,)
    on_tpu = jax.devices()[0].platform == "tpu"

    if on_tpu:
        seed_arr = jnp.asarray([seed], dtype=jnp.int32)
        kernel = functools.partial(_noise_kernel_onchip,
                                   mean=float(mean), std=float(std))
        out2d = pl.pallas_call(
            kernel,
            out_shape=jax.ShapeDtypeStruct((rows, _LANES), orig_dtype),
            grid_spec=pltpu.PrefetchScalarGridSpec(
                num_scalar_prefetch=1,
                grid=grid,
                in_specs=[pl.BlockSpec((tile_rows, _LANES),
                                       lambda i, seed: (i, 0))],
                out_specs=pl.BlockSpec((tile_rows, _LANES),
                                       lambda i, seed: (i, 0)),
            ),
            compiler_params=pltpu.CompilerParams(
                dimension_semantics=("parallel",),
                has_side_effects=True,  # stateful PRNG mutation
            ),
        )(seed_arr, x2d)
    else:
        # Mosaic PRNG primitives do not lower off-TPU (e.g. interpret on CPU):
        # precompute the normal noise and keep only the fused affine-add in
        # the (still tiled, lane-dense) kernel.
        key = jax.random.PRNGKey(seed)
        noise = jax.random.normal(key, (rows, _LANES), dtype=jnp.float32)
        kernel = functools.partial(_noise_kernel_addonly,
                                   mean=float(mean), std=float(std))
        out2d = pl.pallas_call(
            kernel,
            out_shape=jax.ShapeDtypeStruct((rows, _LANES), orig_dtype),
            grid=grid,
            in_specs=[pl.BlockSpec((tile_rows, _LANES), lambda i: (i, 0)),
                      pl.BlockSpec((tile_rows, _LANES), lambda i: (i, 0))],
            out_specs=pl.BlockSpec((tile_rows, _LANES), lambda i: (i, 0)),
            compiler_params=pltpu.CompilerParams(
                dimension_semantics=("parallel",),
            ),
        )(x2d, noise)

    return out2d.reshape(-1)[:total].reshape(orig_shape)


if __name__ == "__main__":
    key = jax.random.PRNGKey(0)
    # NCHW, matching a typical conv-style input for this augmentation module.
    x = jax.random.normal(key, (2, 4, 16, 16), dtype=jnp.float32)

    mean, std = 0.0, 0.1
    out = gaussian_noise(x, seed=0, mean=mean, std=std)
    out = jax.block_until_ready(out)

    # Sanity checks: shape/dtype preserved, noise magnitude consistent with std.
    assert out.shape == x.shape
    assert out.dtype == x.dtype
    diff = (out - x) - mean
    assert float(jnp.max(jnp.abs(diff))) < 10.0 * std  # ~never exceeded for N(0, std)
    assert float(jnp.std(diff)) > 0.0                  # noise actually added

    print("KERNEL_OK")
</pallas_src>

<mosaic_0001>
module attributes {stable_mosaic.version = 11 : i64} {
  func.func @_noise_kernel_addonly(%arg0: i32, %arg1: memref<8x1024xf32, #tpu.memory_space<vmem>>, %arg2: memref<8x1024xf32, #tpu.memory_space<vmem>>, %arg3: memref<8x1024xf32, #tpu.memory_space<vmem>>) attributes {dimension_semantics = [#tpu.dimension_semantics<parallel>], iteration_bounds = array<i64: 1>, scalar_prefetch = 0 : i64, scratch_operands = 0 : i64, tpu.core_type = #tpu.core_type<tc>, window_params = [{transform_indices = @transform_0, window_bounds = array<i64: 8, 1024>}, {transform_indices = @transform_1, window_bounds = array<i64: 8, 1024>}, {transform_indices = @transform_2, window_bounds = array<i64: 8, 1024>}]} {
    %c0 = arith.constant 0 : index
    %c0_0 = arith.constant 0 : index
    %0 = vector.load %arg1[%c0, %c0_0] : memref<8x1024xf32, #tpu.memory_space<vmem>>, vector<8x1024xf32>
    %c0_1 = arith.constant 0 : index
    %c0_2 = arith.constant 0 : index
    %1 = vector.load %arg2[%c0_1, %c0_2] : memref<8x1024xf32, #tpu.memory_space<vmem>>, vector<8x1024xf32>
    %cst = arith.constant 1.000000e-01 : f32
    %2 = vector.broadcast %cst : f32 to vector<8x1024xf32>
    %3 = arith.mulf %1, %2 : vector<8x1024xf32>
    %4 = arith.addf %0, %3 : vector<8x1024xf32>
    %cst_3 = arith.constant 0.000000e+00 : f32
    %5 = vector.broadcast %cst_3 : f32 to vector<8x1024xf32>
    %6 = arith.addf %4, %5 : vector<8x1024xf32>
    %c0_4 = arith.constant 0 : index
    %c0_5 = arith.constant 0 : index
    %7 = vector.load %arg3[%c0_4, %c0_5] : memref<8x1024xf32, #tpu.memory_space<vmem>>, vector<8x1024xf32>
    tpu.vector_store %arg3[%c0_4, %c0_5], %6 {strides = array<i32>} : memref<8x1024xf32, #tpu.memory_space<vmem>>, vector<8x1024xf32>,
    return
  }
  func.func @transform_0(%arg0: i32) -> (i32, i32) {
    %c0_i32 = arith.constant 0 : i32
    %c0_i32_0 = arith.constant 0 : i32
    return %arg0, %c0_i32 : i32, i32
  }
  func.func @transform_1(%arg0: i32) -> (i32, i32) {
    %c0_i32 = arith.constant 0 : i32
    %c0_i32_0 = arith.constant 0 : i32
    return %arg0, %c0_i32 : i32, i32
  }
  func.func @transform_2(%arg0: i32) -> (i32, i32) {
    %c0_i32 = arith.constant 0 : i32
    %c0_i32_0 = arith.constant 0 : i32
    return %arg0, %c0_i32 : i32, i32
  }
}

</mosaic_0001>

<llo_original>
// kernel: tpu_custom_call.1
$region0: #{tpu_custom_call.1}
  #allocation0 [shape = 'u32[]', space=smem, size = 0x4, offset = 0x4, fixed_abs, tag = 'smem constant byte address 0x4 - core index']
  #allocation1 [shape = 'u32[72,128]{1,0:T(1,128)}', space=vmem, size = 0x9000, scoped, tag = 'internal scratch']
  %s0 = inlined_call_operand.hbm [shape: f32[8,1024], index: 0, kind: input, shape index: {}]
  %s1 = inlined_call_operand.hbm [shape: f32[8,1024], index: 1, kind: input, shape index: {}]
  %s2 = inlined_call_operand.hbm [shape: f32[8,1024], index: 2, kind: output, shape index: {}]
  %s3 = sld [smem:[#allocation0]]
  $region26: #{tpu_custom_call.1} parent=0
    _
  %s5 = ssub.s32 1, %s3
  %s6 = scalar_select 0, %s5, %s3
  $region1: #{tpu_custom_call.1} parent=0
    #allocation2 [shape = 'u8[32768]{0}', space=vmem, size = 0x8000, scoped, tag = 'input window, operand 0, single buffered']
    #allocation3 [shape = 's32[1]{0}', space=sflag, size = 0x4, scoped, tag = 'scoped memory for tpu_custom_call.1']
    #allocation4 [shape = 's32[1]{0}', space=sflag, size = 0x4, scoped, tag = 'scoped memory for tpu_custom_call.1']
    #allocation5 [shape = 'u8[32768]{0}', space=vmem, size = 0x8000, scoped, tag = 'input window, operand 1, single buffered']
    #allocation6 [shape = 's32[1]{0}', space=sflag, size = 0x4, scoped, tag = 'scoped memory for tpu_custom_call.1']
    #allocation7 [shape = 'u8[32768]{0}', space=vmem, size = 0x8000, scoped, tag = 'output window, operand 0, single buffered']
    %7 = vsyncpa [#allocation3], 0
    %8 = vsyncpa [#allocation6], 0
    %9 = vsyncpa [#allocation4], 0
    // Predicated region
    $region2: #{tpu_custom_call.1} parent=1 // pred_check
      _
    $region3: #{tpu_custom_call.1} parent=1 // pred_check_branch
      %11 = sbr.rel (0) target = $region5
    $region4: #{tpu_custom_call.1} parent=1 // pred_region
      %13 = vsyncadd [#allocation3], 0
      %s15 = sshll.u32 %s0, 4
      %s16 = int_to_ptr.hbm [resolvable:$true] %s15
      %s17 = sshll.u32 [#allocation2], 4
      %s18 = int_to_ptr.vmem [resolvable:$true] %s17
      %20 = dma.hbm_to_vmem [thread:$0]  %s16, 1024, %s18, [#allocation3]
    $region5: #{tpu_custom_call.1} parent=1 // pred_fallthru
      _
    // Predicated region
    $region6: #{tpu_custom_call.1} parent=1 // pred_check
      _
    $region7: #{tpu_custom_call.1} parent=1 // pred_check_branch
      %22 = sbr.rel (0) target = $region9
    $region8: #{tpu_custom_call.1} parent=1 // pred_region
      %24 = vsyncadd [#allocation6], 0
      %s26 = sshll.u32 %s1, 4
      %s27 = int_to_ptr.hbm [resolvable:$true] %s26
      %s28 = sshll.u32 [#allocation5], 4
      %s29 = int_to_ptr.vmem [resolvable:$true] %s28
      %31 = dma.hbm_to_vmem [thread:$0]  %s27, 1024, %s29, [#allocation6]
    $region9: #{tpu_custom_call.1} parent=1 // pred_fallthru
      _
    // Predicated region
    $region10: #{tpu_custom_call.1} parent=1 // pred_check
      _
    $region11: #{tpu_custom_call.1} parent=1 // pred_check_branch
      %33 = sbr.rel (0) target = $region13
    $region12: #{tpu_custom_call.1} parent=1 // pred_region
      %35 = dma.done [#allocation3], 1024
    $region13: #{tpu_custom_call.1} parent=1 // pred_fallthru
      _
    // Predicated region
    $region14: #{tpu_custom_call.1} parent=1 // pred_check
      _
    $region15: #{tpu_custom_call.1} parent=1 // pred_check_branch
      %37 = sbr.rel (0) target = $region17
    $region16: #{tpu_custom_call.1} parent=1 // pred_region
      %39 = dma.done [#allocation6], 1024
    $region17: #{tpu_custom_call.1} parent=1 // pred_fallthru
      _
    %v40 = vld [vmem:[#allocation2] sm:$0xff]
    %v41 = vld [vmem:[#allocation2 + $0x8] sm:$0xff]
    %v42 = vld [vmem:[#allocation2 + $0x10] sm:$0xff]
    %v43 = vld [vmem:[#allocation2 + $0x18] sm:$0xff]
    %v44 = vld [vmem:[#allocation2 + $0x20] sm:$0xff]
    %v45 = vld [vmem:[#allocation2 + $0x28] sm:$0xff]
    %v46 = vld [vmem:[#allocation2 + $0x30] sm:$0xff]
    %v47 = vld [vmem:[#allocation2 + $0x38] sm:$0xff]
    %v48 = vld [vmem:[#allocation5] sm:$0xff]
    %v49 = vld [vmem:[#allocation5 + $0x8] sm:$0xff]
    %v50 = vld [vmem:[#allocation5 + $0x10] sm:$0xff]
    %v51 = vld [vmem:[#allocation5 + $0x18] sm:$0xff]
    %v52 = vld [vmem:[#allocation5 + $0x20] sm:$0xff]
    %v53 = vld [vmem:[#allocation5 + $0x28] sm:$0xff]
    %v54 = vld [vmem:[#allocation5 + $0x30] sm:$0xff]
    %v55 = vld [vmem:[#allocation5 + $0x38] sm:$0xff]
    %v56 = vmul.f32 %v48, 0.1
    %v57 = vmul.f32 %v49, 0.1
    %v58 = vmul.f32 %v50, 0.1
    %v59 = vmul.f32 %v51, 0.1
    %v60 = vmul.f32 %v52, 0.1
    %v61 = vmul.f32 %v53, 0.1
    %v62 = vmul.f32 %v54, 0.1
    %v63 = vmul.f32 %v55, 0.1
    %v64 = vadd.f32 %v40, %v56
    %v65 = vadd.f32 %v41, %v57
    %v66 = vadd.f32 %v42, %v58
    %v67 = vadd.f32 %v43, %v59
    %v68 = vadd.f32 %v44, %v60
    %v69 = vadd.f32 %v45, %v61
    %v70 = vadd.f32 %v46, %v62
    %v71 = vadd.f32 %v47, %v63
    %v72 = vadd.f32 %v64, 0.0
    %v73 = vadd.f32 %v65, 0.0
    %v74 = vadd.f32 %v66, 0.0
    %v75 = vadd.f32 %v67, 0.0
    %v76 = vadd.f32 %v68, 0.0
    %v77 = vadd.f32 %v69, 0.0
    %v78 = vadd.f32 %v70, 0.0
    %v79 = vadd.f32 %v71, 0.0
    %80 = vst [vmem:[#allocation7] sm:$0xff] %v72
    %81 = vst [vmem:[#allocation7 + $0x8] sm:$0xff] %v73
    %82 = vst [vmem:[#allocation7 + $0x10] sm:$0xff] %v74
    %83 = vst [vmem:[#allocation7 + $0x18] sm:$0xff] %v75
    %84 = vst [vmem:[#allocation7 + $0x20] sm:$0xff] %v76
    %85 = vst [vmem:[#allocation7 + $0x28] sm:$0xff] %v77
    %86 = vst [vmem:[#allocation7 + $0x30] sm:$0xff] %v78
    %87 = vst [vmem:[#allocation7 + $0x38] sm:$0xff] %v79
    // Predicated region
    $region18: #{tpu_custom_call.1} parent=1 // pred_check
      _
    $region19: #{tpu_custom_call.1} parent=1 // pred_check_branch
      %89 = sbr.rel (0) target = $region21
    $region20: #{tpu_custom_call.1} parent=1 // pred_region
      %91 = vsyncadd [#allocation4], 0
      %s93 = sshll.u32 [#allocation7], 4
      %s94 = int_to_ptr.vmem [resolvable:$true] %s93
      %s95 = sshll.u32 %s2, 4
      %s96 = int_to_ptr.hbm [resolvable:$true] %s95
      %98 = dma.vmem_to_hbm [thread:$0]  %s94, 1024, %s96, [#allocation4]
    $region21: #{tpu_custom_call.1} parent=1 // pred_fallthru
      _
    // Predicated region
    $region22: #{tpu_custom_call.1} parent=1 // pred_check
      _
    $region23: #{tpu_custom_call.1} parent=1 // pred_check_branch
      %100 = sbr.rel (0) target = $region25
    $region24: #{tpu_custom_call.1} parent=1 // pred_region
      %102 = dma.done [#allocation4], 1024
    $region25: #{tpu_custom_call.1} parent=1 // pred_fallthru
      _
    %103 = vsyncpa [#allocation3], 1
    %104 = vsyncpa [#allocation6], 1
    %105 = vsyncpa [#allocation4], 1

</llo_original>
